<compile_context>
chip_gen: v7x
topology: tpu7x:2x2x1
jax: 0.10.0
libtpu: 0.0.40
codegen_flags: <defaults>
</compile_context>

<pallas_src>
import math
from functools import partial

import jax
import jax.numpy as jnp
import numpy as np
from jax.experimental import pallas as pl
from jax.experimental.pallas import tpu as pltpu

_BISECT_ITERS = 18  # bracket width 1.0 -> 2^-18; refinement below makes tau ~exact


def _group_select_kernel(q_ref, k_ref, vt_ref, w_ref, out_ref, mask_ref, *,
                         n_iters, slab_t, fold_into_key):
    k = k_ref[...]        # (BB, S, D)
    w = w_ref[...]        # (D, D)   folded, pre-scaled projection

    if fold_into_key:
        # kw[b,s,:] = W @ k[b,s,:]  (so that z = q @ kw^T == q @ W @ k^T).
        kw = jax.lax.dot_general(k, w, (((2,), (1,)), ((), ())),
                                 preferred_element_type=jnp.float32)  # (BB, S, D)

    T = q_ref.shape[1]
    n_slabs = T // slab_t

    def slab(t0):
        q = q_ref[:, pl.ds(t0, slab_t), :]                            # (BB, TT, D)
        if fold_into_key:
            z = jax.lax.dot_general(q, kw, (((2,), (2,)), ((0,), (0,))),
                                    preferred_element_type=jnp.float32)
        else:
            qw = jax.lax.dot_general(q, w, (((2,), (0,)), ((), ())),
                                     preferred_element_type=jnp.float32)
            z = jax.lax.dot_general(qw, k, (((2,), (2,)), ((0,), (0,))),
                                    preferred_element_type=jnp.float32)  # (BB, TT, S)

        # ---- sparsemax along the last (lane) axis, slab stays vreg-resident ----
        # Solve sum(relu(z - tau)) = 1 for tau by bisection on [max(z)-1, max(z)].
        z_max = jnp.max(z, axis=-1, keepdims=True)                    # (BB, TT, 1)
        lo = z_max - 1.0                                              # f(lo) >= 0
        hi = z_max                                                    # f(hi) <  0

        def body(_, carry):
            lo, hi = carry
            mid = 0.5 * (lo + hi)
            f = jnp.sum(jnp.maximum(z - mid, 0.0), axis=-1, keepdims=True) - 1.0
            go_hi = f > 0.0                                           # tau* > mid
            return jnp.where(go_hi, mid, lo), jnp.where(go_hi, hi, mid)

        lo, hi = jax.lax.fori_loop(0, n_iters, body, (lo, hi), unroll=True)

        # Closed-form refinement on the bracketed support (exact when no score
        # lies inside the final bracket; otherwise the clip bounds the error by
        # 2^-n_iters).  k_cnt >= 1 since the row maximum is always in support.
        mid = 0.5 * (lo + hi)
        supp = (z > mid).astype(jnp.float32)
        k_cnt = jnp.maximum(jnp.sum(supp, axis=-1, keepdims=True), 1.0)
        s_sum = jnp.sum(z * supp, axis=-1, keepdims=True)
        tau = jnp.clip((s_sum - 1.0) / k_cnt, lo, hi)
        p = jnp.maximum(z - tau, 0.0)                                 # (BB, TT, S)

        mask_ref[:, pl.ds(t0, slab_t), :] = p.astype(mask_ref.dtype)  # lane-dense on S
        vt = vt_ref[:, pl.ds(t0, slab_t), :]                          # (BB, TT, S)
        row = jnp.sum(p * vt, axis=-1)                                # (BB, TT)
        out_ref[:, :, pl.ds(t0, slab_t)] = row[:, None, :].astype(out_ref.dtype)

    if n_slabs == 1:
        slab(0)
    else:
        def loop_body(s, carry):
            slab(pl.multiple_of(s * slab_t, slab_t))
            return carry
        jax.lax.fori_loop(0, n_slabs, loop_body, 0)


def _vmem_capacity_bytes():
    try:
        cap = getattr(pltpu.get_tpu_info(), "vmem_capacity_bytes", None)
        if cap:
            return int(cap)
    except Exception:
        pass
    return 64 * 1024 * 1024   # conservative fallback (v7x per-core VMEM)


def _pick_block_b(B, T, S, D, vmem_cap):
    """Batch-block size.  Counts double-buffered BlockSpec streams *and* the
    in-kernel intermediates, keeps >= 2 grid steps when B >= 2 (so megacore
    sharding on v7x has work on both TensorCores), and sizes against the
    actual VMEM capacity of the chip generation."""
    stream = 2 * (T * D + S * D + 2 * T * S + T)      # double-buffered in/out tiles
    interm = 4 * T * S + 2 * max(S, T) * D            # z/p/supp slab + projected side
    per_b = 4 * (stream + interm)                     # f32 bytes
    budget = max(2 * 1024 * 1024, int(vmem_cap * 0.45)) - 2 * D * D * 4
    cap = max(1, budget // max(per_b, 1))
    target = -(-B // 2) if B >= 2 else B              # ceil(B/2): >= 2 grid steps
    return max(1, min(B, cap, target))


def _pick_slab_t(T, S, D, BB, target_bytes=96 * 1024):
    """Row-slab size for the sparsemax: big enough to keep the MXU busy, small
    enough that the slab (z, p, supp, vt, q) stays ~vreg-resident across all
    bisection iterations."""
    per_row = 4 * BB * (4 * S + 2 * D)
    tt = max(1, min(T, target_bytes // max(per_row, 1)))
    if tt >= 8:
        tt = (tt // 8) * 8                            # sublane-aligned slabs
    while T % tt:                                     # keep TT a divisor of T
        tt -= 1
    return max(1, tt)


@partial(jax.jit, static_argnames=("scale", "mask_dtype"))
def group_select_layer(query, key, value, input_weights, scale=1.0,
                       mask_dtype=jnp.float32):
    B, T, D = query.shape
    S = key.shape[1]
    wq = input_weights[:D]                  # (D, D)
    wk = input_weights[D:2 * D]             # (D, D)  (w_v chunk unused)
    # Folded projection with the attention scale baked in:
    #   z = (q @ Wq^T) @ (k @ Wk^T)^T * c  ==  q @ (c * Wq^T @ Wk) @ k^T
    w_fold = (wq.T @ wk) * (float(scale) / math.sqrt(D))
    v_t = jnp.swapaxes(value, 1, 2)         # (B, T, S), lane-dense on S (XLA-side)

    vmem_cap = _vmem_capacity_bytes()
    vmem_limit = int(min(vmem_cap * 0.62, 96 * 1024 * 1024))
    BB = _pick_block_b(B, T, S, D, vmem_cap)
    TT = _pick_slab_t(T, S, D, BB)
    fold_into_key = S < T                   # project the smaller side through W
    grid = (pl.cdiv(B, BB),)

    kernel = partial(_group_select_kernel, n_iters=_BISECT_ITERS,
                     slab_t=TT, fold_into_key=fold_into_key)
    attn_out3, mask_ts = pl.pallas_call(
        kernel,
        out_shape=(
            jax.ShapeDtypeStruct((B, 1, T), jnp.float32),
            jax.ShapeDtypeStruct((B, T, S), mask_dtype),
        ),
        grid_spec=pltpu.PrefetchScalarGridSpec(
            num_scalar_prefetch=0,
            grid=grid,
            in_specs=[
                pl.BlockSpec((BB, T, D), lambda b: (b, 0, 0)),   # query
                pl.BlockSpec((BB, S, D), lambda b: (b, 0, 0)),   # key
                pl.BlockSpec((BB, T, S), lambda b: (b, 0, 0)),   # value^T
                pl.BlockSpec((D, D), lambda b: (0, 0)),          # folded weight
            ],
            out_specs=[
                pl.BlockSpec((BB, 1, T), lambda b: (b, 0, 0)),   # attn out, lane-dense on T
                pl.BlockSpec((BB, T, S), lambda b: (b, 0, 0)),   # mask (B,T,S)
            ],
        ),
        compiler_params=pltpu.CompilerParams(
            dimension_semantics=("parallel",),
            vmem_limit_bytes=vmem_limit,
        ),
    )(query, key, v_t, w_fold)

    attn_out = attn_out3[:, 0, :]           # (B, T)
    mask = jnp.swapaxes(mask_ts, 1, 2)      # (B, S, T) -- wrapper-side transpose
    return attn_out, mask


# ---------------- pure-JAX reference (sort-based sparsemax) ----------------
def _sparsemax_ref(z):
    zs = jnp.flip(jnp.sort(z, axis=-1), axis=-1)
    css = jnp.cumsum(zs, axis=-1)
    r = jnp.arange(1, z.shape[-1] + 1, dtype=z.dtype)
    support = (1.0 + r * zs) > css
    k = jnp.sum(support, axis=-1, keepdims=True)
    tau = (jnp.take_along_axis(css, k - 1, axis=-1) - 1.0) / k.astype(z.dtype)
    return jnp.maximum(z - tau, 0.0)


def group_select_ref(query, key, value, input_weights, scale=1.0):
    D = query.shape[-1]
    wq, wk = input_weights[:D], input_weights[D:2 * D]
    q = query @ wq.T
    k = key @ wk.T
    scores = jnp.einsum("btd,bsd->bts", q, k) * (scale / math.sqrt(D))
    attn_weights = _sparsemax_ref(scores)            # (B, T, S)
    mask = jnp.swapaxes(attn_weights, -1, -2)        # (B, S, T)
    attn_outputs = (value * mask).sum(axis=1)        # (B, T)
    return attn_outputs, mask


if __name__ == "__main__":
    B, T, S, D = 2, 8, 16, 32
    rng = jax.random.PRNGKey(0)
    kq, kk, kv = jax.random.split(rng, 3)
    query = jax.random.normal(kq, (B, T, D), jnp.float32)
    key = jax.random.normal(kk, (B, S, D), jnp.float32)
    value = jax.random.normal(kv, (B, S, T), jnp.float32)

    # init_weights_identity=True -> input_weights = eye[None].expand(3,D,D).reshape(-1,D)
    input_weights = jnp.tile(jnp.eye(D, dtype=jnp.float32), (3, 1))   # (3D, D)

    attn_out, mask = group_select_layer(query, key, value, input_weights, scale=1.0)
    jax.block_until_ready((attn_out, mask))

    ref_out, ref_mask = group_select_ref(query, key, value, input_weights, 1.0)
    np.testing.assert_allclose(np.asarray(attn_out), np.asarray(ref_out),
                               rtol=1e-5, atol=1e-5)
    np.testing.assert_allclose(np.asarray(mask), np.asarray(ref_mask),
                               rtol=1e-5, atol=1e-5)
    print("KERNEL_OK")
</pallas_src>

<mosaic_0001>
module attributes {stable_mosaic.version = 11 : i64} {
  func.func @_group_select_kernel(%arg0: i32, %arg1: memref<1x8x32xf32, #tpu.memory_space<vmem>>, %arg2: memref<1x16x32xf32, #tpu.memory_space<vmem>>, %arg3: memref<1x8x16xf32, #tpu.memory_space<vmem>>, %arg4: memref<32x32xf32, #tpu.memory_space<vmem>>, %arg5: memref<1x1x8xf32, #tpu.memory_space<vmem>>, %arg6: memref<1x8x16xf32, #tpu.memory_space<vmem>>) attributes {dimension_semantics = [#tpu.dimension_semantics<parallel>], iteration_bounds = array<i64: 2>, scalar_prefetch = 0 : i64, scratch_operands = 0 : i64, tpu.core_type = #tpu.core_type<tc>, window_params = [{transform_indices = @transform_0, window_bounds = array<i64: 1, 8, 32>}, {transform_indices = @transform_1, window_bounds = array<i64: 1, 16, 32>}, {transform_indices = @transform_2, window_bounds = array<i64: 1, 8, 16>}, {pipeline_mode = #tpu.pipeline_mode<synchronous>, transform_indices = @transform_3, window_bounds = array<i64: 32, 32>}, {transform_indices = @transform_4, window_bounds = array<i64: 1, 1, 8>}, {transform_indices = @transform_5, window_bounds = array<i64: 1, 8, 16>}]} {
    %c0 = arith.constant 0 : index
    %c0_0 = arith.constant 0 : index
    %c0_1 = arith.constant 0 : index
    %0 = vector.load %arg2[%c0, %c0_0, %c0_1] : memref<1x16x32xf32, #tpu.memory_space<vmem>>, vector<1x16x32xf32>
    %c0_2 = arith.constant 0 : index
    %c0_3 = arith.constant 0 : index
    %1 = vector.load %arg4[%c0_2, %c0_3] : memref<32x32xf32, #tpu.memory_space<vmem>>, vector<32x32xf32>
    %c0_4 = arith.constant 0 : index
    %c0_5 = arith.constant 0 : index
    %c0_6 = arith.constant 0 : index
    %2 = vector.load %arg1[%c0_4, %c0_5, %c0_6] : memref<1x8x32xf32, #tpu.memory_space<vmem>>, vector<1x8x32xf32>
    %cst = arith.constant dense<0.000000e+00> : vector<1x8x32xf32>
    %3 = tpu.matmul %2, %1, %cst {dimension_numbers = #tpu.dot_dimension_numbers<[2], [0], [0, 1], [1], [0, 0, 0, 1, 1, 1], [], []>} : vector<1x8x32xf32>, vector<32x32xf32>, vector<1x8x32xf32> -> vector<1x8x32xf32>
    %cst_7 = arith.constant dense<0.000000e+00> : vector<1x8x16xf32>
    %4 = tpu.matmul %3, %0, %cst_7 {dimension_numbers = #tpu.dot_dimension_numbers<[2], [2], [1], [1], [0, 0, 0, 1, 1, 1], [0], [0]>} : vector<1x8x32xf32>, vector<1x16x32xf32>, vector<1x8x16xf32> -> vector<1x8x16xf32>
    %cst_8 = arith.constant dense<0xFF800000> : vector<1x8xf32>
    %5 = vector.multi_reduction <maximumf>, %4, %cst_8 [2] : vector<1x8x16xf32> to vector<1x8xf32>
    %6 = vector.shape_cast %5 : vector<1x8xf32> to vector<1x8x1xf32>
    %cst_9 = arith.constant 1.000000e+00 : f32
    %7 = vector.broadcast %cst_9 : f32 to vector<1x8x1xf32>
    %8 = arith.subf %6, %7 : vector<1x8x1xf32>
    %c0_i32 = arith.constant 0 : i32
    %9 = arith.addf %8, %6 : vector<1x8x1xf32>
    %cst_10 = arith.constant 5.000000e-01 : f32
    %10 = vector.broadcast %cst_10 : f32 to vector<1x8x1xf32>
    %11 = arith.mulf %10, %9 : vector<1x8x1xf32>
    %12 = vector.broadcast %11 : vector<1x8x1xf32> to vector<1x8x16xf32>
    %13 = arith.subf %4, %12 : vector<1x8x16xf32>
    %cst_11 = arith.constant 0.000000e+00 : f32
    %14 = vector.broadcast %cst_11 : f32 to vector<1x8x16xf32>
    %15 = arith.maximumf %13, %14 : vector<1x8x16xf32>
    %cst_12 = arith.constant dense<0.000000e+00> : vector<1x8xf32>
    %16 = vector.multi_reduction <add>, %15, %cst_12 [2] : vector<1x8x16xf32> to vector<1x8xf32>
    %17 = vector.shape_cast %16 : vector<1x8xf32> to vector<1x8x1xf32>
    %cst_13 = arith.constant 1.000000e+00 : f32
    %18 = vector.broadcast %cst_13 : f32 to vector<1x8x1xf32>
    %19 = arith.subf %17, %18 : vector<1x8x1xf32>
    %cst_14 = arith.constant 0.000000e+00 : f32
    %20 = vector.broadcast %cst_14 : f32 to vector<1x8x1xf32>
    %21 = arith.cmpf ogt, %19, %20 : vector<1x8x1xf32>
    %22 = arith.select %21, %11, %8 : vector<1x8x1xi1>, vector<1x8x1xf32>
    %23 = arith.select %21, %6, %11 : vector<1x8x1xi1>, vector<1x8x1xf32>
    %c1_i32 = arith.constant 1 : i32
    %24 = arith.addf %22, %23 : vector<1x8x1xf32>
    %cst_15 = arith.constant 5.000000e-01 : f32
    %25 = vector.broadcast %cst_15 : f32 to vector<1x8x1xf32>
    %26 = arith.mulf %25, %24 : vector<1x8x1xf32>
    %27 = vector.broadcast %26 : vector<1x8x1xf32> to vector<1x8x16xf32>
    %28 = arith.subf %4, %27 : vector<1x8x16xf32>
    %cst_16 = arith.constant 0.000000e+00 : f32
    %29 = vector.broadcast %cst_16 : f32 to vector<1x8x16xf32>
    %30 = arith.maximumf %28, %29 : vector<1x8x16xf32>
    %cst_17 = arith.constant dense<0.000000e+00> : vector<1x8xf32>
    %31 = vector.multi_reduction <add>, %30, %cst_17 [2] : vector<1x8x16xf32> to vector<1x8xf32>
    %32 = vector.shape_cast %31 : vector<1x8xf32> to vector<1x8x1xf32>
    %cst_18 = arith.constant 1.000000e+00 : f32
    %33 = vector.broadcast %cst_18 : f32 to vector<1x8x1xf32>
    %34 = arith.subf %32, %33 : vector<1x8x1xf32>
    %cst_19 = arith.constant 0.000000e+00 : f32
    %35 = vector.broadcast %cst_19 : f32 to vector<1x8x1xf32>
    %36 = arith.cmpf ogt, %34, %35 : vector<1x8x1xf32>
    %37 = arith.select %36, %26, %22 : vector<1x8x1xi1>, vector<1x8x1xf32>
    %38 = arith.select %36, %23, %26 : vector<1x8x1xi1>, vector<1x8x1xf32>
    %c2_i32 = arith.constant 2 : i32
    %39 = arith.addf %37, %38 : vector<1x8x1xf32>
    %cst_20 = arith.constant 5.000000e-01 : f32
    %40 = vector.broadcast %cst_20 : f32 to vector<1x8x1xf32>
    %41 = arith.mulf %40, %39 : vector<1x8x1xf32>
    %42 = vector.broadcast %41 : vector<1x8x1xf32> to vector<1x8x16xf32>
    %43 = arith.subf %4, %42 : vector<1x8x16xf32>
    %cst_21 = arith.constant 0.000000e+00 : f32
    %44 = vector.broadcast %cst_21 : f32 to vector<1x8x16xf32>
    %45 = arith.maximumf %43, %44 : vector<1x8x16xf32>
    %cst_22 = arith.constant dense<0.000000e+00> : vector<1x8xf32>
    %46 = vector.multi_reduction <add>, %45, %cst_22 [2] : vector<1x8x16xf32> to vector<1x8xf32>
    %47 = vector.shape_cast %46 : vector<1x8xf32> to vector<1x8x1xf32>
    %cst_23 = arith.constant 1.000000e+00 : f32
    %48 = vector.broadcast %cst_23 : f32 to vector<1x8x1xf32>
    %49 = arith.subf %47, %48 : vector<1x8x1xf32>
    %cst_24 = arith.constant 0.000000e+00 : f32
    %50 = vector.broadcast %cst_24 : f32 to vector<1x8x1xf32>
    %51 = arith.cmpf ogt, %49, %50 : vector<1x8x1xf32>
    %52 = arith.select %51, %41, %37 : vector<1x8x1xi1>, vector<1x8x1xf32>
    %53 = arith.select %51, %38, %41 : vector<1x8x1xi1>, vector<1x8x1xf32>
    %c3_i32 = arith.constant 3 : i32
    %54 = arith.addf %52, %53 : vector<1x8x1xf32>
    %cst_25 = arith.constant 5.000000e-01 : f32
    %55 = vector.broadcast %cst_25 : f32 to vector<1x8x1xf32>
    %56 = arith.mulf %55, %54 : vector<1x8x1xf32>
    %57 = vector.broadcast %56 : vector<1x8x1xf32> to vector<1x8x16xf32>
    %58 = arith.subf %4, %57 : vector<1x8x16xf32>
    %cst_26 = arith.constant 0.000000e+00 : f32
    %59 = vector.broadcast %cst_26 : f32 to vector<1x8x16xf32>
    %60 = arith.maximumf %58, %59 : vector<1x8x16xf32>
    %cst_27 = arith.constant dense<0.000000e+00> : vector<1x8xf32>
    %61 = vector.multi_reduction <add>, %60, %cst_27 [2] : vector<1x8x16xf32> to vector<1x8xf32>
    %62 = vector.shape_cast %61 : vector<1x8xf32> to vector<1x8x1xf32>
    %cst_28 = arith.constant 1.000000e+00 : f32
    %63 = vector.broadcast %cst_28 : f32 to vector<1x8x1xf32>
    %64 = arith.subf %62, %63 : vector<1x8x1xf32>
    %cst_29 = arith.constant 0.000000e+00 : f32
    %65 = vector.broadcast %cst_29 : f32 to vector<1x8x1xf32>
    %66 = arith.cmpf ogt, %64, %65 : vector<1x8x1xf32>
    %67 = arith.select %66, %56, %52 : vector<1x8x1xi1>, vector<1x8x1xf32>
    %68 = arith.select %66, %53, %56 : vector<1x8x1xi1>, vector<1x8x1xf32>
    %c4_i32 = arith.constant 4 : i32
    %69 = arith.addf %67, %68 : vector<1x8x1xf32>
    %cst_30 = arith.constant 5.000000e-01 : f32
    %70 = vector.broadcast %cst_30 : f32 to vector<1x8x1xf32>
    %71 = arith.mulf %70, %69 : vector<1x8x1xf32>
    %72 = vector.broadcast %71 : vector<1x8x1xf32> to vector<1x8x16xf32>
    %73 = arith.subf %4, %72 : vector<1x8x16xf32>
    %cst_31 = arith.constant 0.000000e+00 : f32
    %74 = vector.broadcast %cst_31 : f32 to vector<1x8x16xf32>
    %75 = arith.maximumf %73, %74 : vector<1x8x16xf32>
    %cst_32 = arith.constant dense<0.000000e+00> : vector<1x8xf32>
    %76 = vector.multi_reduction <add>, %75, %cst_32 [2] : vector<1x8x16xf32> to vector<1x8xf32>
    %77 = vector.shape_cast %76 : vector<1x8xf32> to vector<1x8x1xf32>
    %cst_33 = arith.constant 1.000000e+00 : f32
    %78 = vector.broadcast %cst_33 : f32 to vector<1x8x1xf32>
    %79 = arith.subf %77, %78 : vector<1x8x1xf32>
    %cst_34 = arith.constant 0.000000e+00 : f32
    %80 = vector.broadcast %cst_34 : f32 to vector<1x8x1xf32>
    %81 = arith.cmpf ogt, %79, %80 : vector<1x8x1xf32>
    %82 = arith.select %81, %71, %67 : vector<1x8x1xi1>, vector<1x8x1xf32>
    %83 = arith.select %81, %68, %71 : vector<1x8x1xi1>, vector<1x8x1xf32>
    %c5_i32 = arith.constant 5 : i32
    %84 = arith.addf %82, %83 : vector<1x8x1xf32>
    %cst_35 = arith.constant 5.000000e-01 : f32
    %85 = vector.broadcast %cst_35 : f32 to vector<1x8x1xf32>
    %86 = arith.mulf %85, %84 : vector<1x8x1xf32>
    %87 = vector.broadcast %86 : vector<1x8x1xf32> to vector<1x8x16xf32>
    %88 = arith.subf %4, %87 : vector<1x8x16xf32>
    %cst_36 = arith.constant 0.000000e+00 : f32
    %89 = vector.broadcast %cst_36 : f32 to vector<1x8x16xf32>
    %90 = arith.maximumf %88, %89 : vector<1x8x16xf32>
    %cst_37 = arith.constant dense<0.000000e+00> : vector<1x8xf32>
    %91 = vector.multi_reduction <add>, %90, %cst_37 [2] : vector<1x8x16xf32> to vector<1x8xf32>
    %92 = vector.shape_cast %91 : vector<1x8xf32> to vector<1x8x1xf32>
    %cst_38 = arith.constant 1.000000e+00 : f32
    %93 = vector.broadcast %cst_38 : f32 to vector<1x8x1xf32>
    %94 = arith.subf %92, %93 : vector<1x8x1xf32>
    %cst_39 = arith.constant 0.000000e+00 : f32
    %95 = vector.broadcast %cst_39 : f32 to vector<1x8x1xf32>
    %96 = arith.cmpf ogt, %94, %95 : vector<1x8x1xf32>
    %97 = arith.select %96, %86, %82 : vector<1x8x1xi1>, vector<1x8x1xf32>
    %98 = arith.select %96, %83, %86 : vector<1x8x1xi1>, vector<1x8x1xf32>
    %c6_i32 = arith.constant 6 : i32
    %99 = arith.addf %97, %98 : vector<1x8x1xf32>
    %cst_40 = arith.constant 5.000000e-01 : f32
    %100 = vector.broadcast %cst_40 : f32 to vector<1x8x1xf32>
    %101 = arith.mulf %100, %99 : vector<1x8x1xf32>
    %102 = vector.broadcast %101 : vector<1x8x1xf32> to vector<1x8x16xf32>
    %103 = arith.subf %4, %102 : vector<1x8x16xf32>
    %cst_41 = arith.constant 0.000000e+00 : f32
    %104 = vector.broadcast %cst_41 : f32 to vector<1x8x16xf32>
    %105 = arith.maximumf %103, %104 : vector<1x8x16xf32>
    %cst_42 = arith.constant dense<0.000000e+00> : vector<1x8xf32>
    %106 = vector.multi_reduction <add>, %105, %cst_42 [2] : vector<1x8x16xf32> to vector<1x8xf32>
    %107 = vector.shape_cast %106 : vector<1x8xf32> to vector<1x8x1xf32>
    %cst_43 = arith.constant 1.000000e+00 : f32
    %108 = vector.broadcast %cst_43 : f32 to vector<1x8x1xf32>
    %109 = arith.subf %107, %108 : vector<1x8x1xf32>
    %cst_44 = arith.constant 0.000000e+00 : f32
    %110 = vector.broadcast %cst_44 : f32 to vector<1x8x1xf32>
    %111 = arith.cmpf ogt, %109, %110 : vector<1x8x1xf32>
    %112 = arith.select %111, %101, %97 : vector<1x8x1xi1>, vector<1x8x1xf32>
    %113 = arith.select %111, %98, %101 : vector<1x8x1xi1>, vector<1x8x1xf32>
    %c7_i32 = arith.constant 7 : i32
    %114 = arith.addf %112, %113 : vector<1x8x1xf32>
    %cst_45 = arith.constant 5.000000e-01 : f32
    %115 = vector.broadcast %cst_45 : f32 to vector<1x8x1xf32>
    %116 = arith.mulf %115, %114 : vector<1x8x1xf32>
    %117 = vector.broadcast %116 : vector<1x8x1xf32> to vector<1x8x16xf32>
    %118 = arith.subf %4, %117 : vector<1x8x16xf32>
    %cst_46 = arith.constant 0.000000e+00 : f32
    %119 = vector.broadcast %cst_46 : f32 to vector<1x8x16xf32>
    %120 = arith.maximumf %118, %119 : vector<1x8x16xf32>
    %cst_47 = arith.constant dense<0.000000e+00> : vector<1x8xf32>
    %121 = vector.multi_reduction <add>, %120, %cst_47 [2] : vector<1x8x16xf32> to vector<1x8xf32>
    %122 = vector.shape_cast %121 : vector<1x8xf32> to vector<1x8x1xf32>
    %cst_48 = arith.constant 1.000000e+00 : f32
    %123 = vector.broadcast %cst_48 : f32 to vector<1x8x1xf32>
    %124 = arith.subf %122, %123 : vector<1x8x1xf32>
    %cst_49 = arith.constant 0.000000e+00 : f32
    %125 = vector.broadcast %cst_49 : f32 to vector<1x8x1xf32>
    %126 = arith.cmpf ogt, %124, %125 : vector<1x8x1xf32>
    %127 = arith.select %126, %116, %112 : vector<1x8x1xi1>, vector<1x8x1xf32>
    %128 = arith.select %126, %113, %116 : vector<1x8x1xi1>, vector<1x8x1xf32>
    %c8_i32 = arith.constant 8 : i32
    %129 = arith.addf %127, %128 : vector<1x8x1xf32>
    %cst_50 = arith.constant 5.000000e-01 : f32
    %130 = vector.broadcast %cst_50 : f32 to vector<1x8x1xf32>
    %131 = arith.mulf %130, %129 : vector<1x8x1xf32>
    %132 = vector.broadcast %131 : vector<1x8x1xf32> to vector<1x8x16xf32>
    %133 = arith.subf %4, %132 : vector<1x8x16xf32>
    %cst_51 = arith.constant 0.000000e+00 : f32
    %134 = vector.broadcast %cst_51 : f32 to vector<1x8x16xf32>
    %135 = arith.maximumf %133, %134 : vector<1x8x16xf32>
    %cst_52 = arith.constant dense<0.000000e+00> : vector<1x8xf32>
    %136 = vector.multi_reduction <add>, %135, %cst_52 [2] : vector<1x8x16xf32> to vector<1x8xf32>
    %137 = vector.shape_cast %136 : vector<1x8xf32> to vector<1x8x1xf32>
    %cst_53 = arith.constant 1.000000e+00 : f32
    %138 = vector.broadcast %cst_53 : f32 to vector<1x8x1xf32>
    %139 = arith.subf %137, %138 : vector<1x8x1xf32>
    %cst_54 = arith.constant 0.000000e+00 : f32
    %140 = vector.broadcast %cst_54 : f32 to vector<1x8x1xf32>
    %141 = arith.cmpf ogt, %139, %140 : vector<1x8x1xf32>
    %142 = arith.select %141, %131, %127 : vector<1x8x1xi1>, vector<1x8x1xf32>
    %143 = arith.select %141, %128, %131 : vector<1x8x1xi1>, vector<1x8x1xf32>
    %c9_i32 = arith.constant 9 : i32
    %144 = arith.addf %142, %143 : vector<1x8x1xf32>
    %cst_55 = arith.constant 5.000000e-01 : f32
    %145 = vector.broadcast %cst_55 : f32 to vector<1x8x1xf32>
    %146 = arith.mulf %145, %144 : vector<1x8x1xf32>
    %147 = vector.broadcast %146 : vector<1x8x1xf32> to vector<1x8x16xf32>
    %148 = arith.subf %4, %147 : vector<1x8x16xf32>
    %cst_56 = arith.constant 0.000000e+00 : f32
    %149 = vector.broadcast %cst_56 : f32 to vector<1x8x16xf32>
    %150 = arith.maximumf %148, %149 : vector<1x8x16xf32>
    %cst_57 = arith.constant dense<0.000000e+00> : vector<1x8xf32>
    %151 = vector.multi_reduction <add>, %150, %cst_57 [2] : vector<1x8x16xf32> to vector<1x8xf32>
    %152 = vector.shape_cast %151 : vector<1x8xf32> to vector<1x8x1xf32>
    %cst_58 = arith.constant 1.000000e+00 : f32
    %153 = vector.broadcast %cst_58 : f32 to vector<1x8x1xf32>
    %154 = arith.subf %152, %153 : vector<1x8x1xf32>
    %cst_59 = arith.constant 0.000000e+00 : f32
    %155 = vector.broadcast %cst_59 : f32 to vector<1x8x1xf32>
    %156 = arith.cmpf ogt, %154, %155 : vector<1x8x1xf32>
    %157 = arith.select %156, %146, %142 : vector<1x8x1xi1>, vector<1x8x1xf32>
    %158 = arith.select %156, %143, %146 : vector<1x8x1xi1>, vector<1x8x1xf32>
    %c10_i32 = arith.constant 10 : i32
    %159 = arith.addf %157, %158 : vector<1x8x1xf32>
    %cst_60 = arith.constant 5.000000e-01 : f32
    %160 = vector.broadcast %cst_60 : f32 to vector<1x8x1xf32>
    %161 = arith.mulf %160, %159 : vector<1x8x1xf32>
    %162 = vector.broadcast %161 : vector<1x8x1xf32> to vector<1x8x16xf32>
    %163 = arith.subf %4, %162 : vector<1x8x16xf32>
    %cst_61 = arith.constant 0.000000e+00 : f32
    %164 = vector.broadcast %cst_61 : f32 to vector<1x8x16xf32>
    %165 = arith.maximumf %163, %164 : vector<1x8x16xf32>
    %cst_62 = arith.constant dense<0.000000e+00> : vector<1x8xf32>
    %166 = vector.multi_reduction <add>, %165, %cst_62 [2] : vector<1x8x16xf32> to vector<1x8xf32>
    %167 = vector.shape_cast %166 : vector<1x8xf32> to vector<1x8x1xf32>
    %cst_63 = arith.constant 1.000000e+00 : f32
    %168 = vector.broadcast %cst_63 : f32 to vector<1x8x1xf32>
    %169 = arith.subf %167, %168 : vector<1x8x1xf32>
    %cst_64 = arith.constant 0.000000e+00 : f32
    %170 = vector.broadcast %cst_64 : f32 to vector<1x8x1xf32>
    %171 = arith.cmpf ogt, %169, %170 : vector<1x8x1xf32>
    %172 = arith.select %171, %161, %157 : vector<1x8x1xi1>, vector<1x8x1xf32>
    %173 = arith.select %171, %158, %161 : vector<1x8x1xi1>, vector<1x8x1xf32>
    %c11_i32 = arith.constant 11 : i32
    %174 = arith.addf %172, %173 : vector<1x8x1xf32>
    %cst_65 = arith.constant 5.000000e-01 : f32
    %175 = vector.broadcast %cst_65 : f32 to vector<1x8x1xf32>
    %176 = arith.mulf %175, %174 : vector<1x8x1xf32>
    %177 = vector.broadcast %176 : vector<1x8x1xf32> to vector<1x8x16xf32>
    %178 = arith.subf %4, %177 : vector<1x8x16xf32>
    %cst_66 = arith.constant 0.000000e+00 : f32
    %179 = vector.broadcast %cst_66 : f32 to vector<1x8x16xf32>
    %180 = arith.maximumf %178, %179 : vector<1x8x16xf32>
    %cst_67 = arith.constant dense<0.000000e+00> : vector<1x8xf32>
    %181 = vector.multi_reduction <add>, %180, %cst_67 [2] : vector<1x8x16xf32> to vector<1x8xf32>
    %182 = vector.shape_cast %181 : vector<1x8xf32> to vector<1x8x1xf32>
    %cst_68 = arith.constant 1.000000e+00 : f32
    %183 = vector.broadcast %cst_68 : f32 to vector<1x8x1xf32>
    %184 = arith.subf %182, %183 : vector<1x8x1xf32>
    %cst_69 = arith.constant 0.000000e+00 : f32
    %185 = vector.broadcast %cst_69 : f32 to vector<1x8x1xf32>
    %186 = arith.cmpf ogt, %184, %185 : vector<1x8x1xf32>
    %187 = arith.select %186, %176, %172 : vector<1x8x1xi1>, vector<1x8x1xf32>
    %188 = arith.select %186, %173, %176 : vector<1x8x1xi1>, vector<1x8x1xf32>
    %c12_i32 = arith.constant 12 : i32
    %189 = arith.addf %187, %188 : vector<1x8x1xf32>
    %cst_70 = arith.constant 5.000000e-01 : f32
    %190 = vector.broadcast %cst_70 : f32 to vector<1x8x1xf32>
    %191 = arith.mulf %190, %189 : vector<1x8x1xf32>
    %192 = vector.broadcast %191 : vector<1x8x1xf32> to vector<1x8x16xf32>
    %193 = arith.subf %4, %192 : vector<1x8x16xf32>
    %cst_71 = arith.constant 0.000000e+00 : f32
    %194 = vector.broadcast %cst_71 : f32 to vector<1x8x16xf32>
    %195 = arith.maximumf %193, %194 : vector<1x8x16xf32>
    %cst_72 = arith.constant dense<0.000000e+00> : vector<1x8xf32>
    %196 = vector.multi_reduction <add>, %195, %cst_72 [2] : vector<1x8x16xf32> to vector<1x8xf32>
    %197 = vector.shape_cast %196 : vector<1x8xf32> to vector<1x8x1xf32>
    %cst_73 = arith.constant 1.000000e+00 : f32
    %198 = vector.broadcast %cst_73 : f32 to vector<1x8x1xf32>
    %199 = arith.subf %197, %198 : vector<1x8x1xf32>
    %cst_74 = arith.constant 0.000000e+00 : f32
    %200 = vector.broadcast %cst_74 : f32 to vector<1x8x1xf32>
    %201 = arith.cmpf ogt, %199, %200 : vector<1x8x1xf32>
    %202 = arith.select %201, %191, %187 : vector<1x8x1xi1>, vector<1x8x1xf32>
    %203 = arith.select %201, %188, %191 : vector<1x8x1xi1>, vector<1x8x1xf32>
    %c13_i32 = arith.constant 13 : i32
    %204 = arith.addf %202, %203 : vector<1x8x1xf32>
    %cst_75 = arith.constant 5.000000e-01 : f32
    %205 = vector.broadcast %cst_75 : f32 to vector<1x8x1xf32>
    %206 = arith.mulf %205, %204 : vector<1x8x1xf32>
    %207 = vector.broadcast %206 : vector<1x8x1xf32> to vector<1x8x16xf32>
    %208 = arith.subf %4, %207 : vector<1x8x16xf32>
    %cst_76 = arith.constant 0.000000e+00 : f32
    %209 = vector.broadcast %cst_76 : f32 to vector<1x8x16xf32>
    %210 = arith.maximumf %208, %209 : vector<1x8x16xf32>
    %cst_77 = arith.constant dense<0.000000e+00> : vector<1x8xf32>
    %211 = vector.multi_reduction <add>, %210, %cst_77 [2] : vector<1x8x16xf32> to vector<1x8xf32>
    %212 = vector.shape_cast %211 : vector<1x8xf32> to vector<1x8x1xf32>
    %cst_78 = arith.constant 1.000000e+00 : f32
    %213 = vector.broadcast %cst_78 : f32 to vector<1x8x1xf32>
    %214 = arith.subf %212, %213 : vector<1x8x1xf32>
    %cst_79 = arith.constant 0.000000e+00 : f32
    %215 = vector.broadcast %cst_79 : f32 to vector<1x8x1xf32>
    %216 = arith.cmpf ogt, %214, %215 : vector<1x8x1xf32>
    %217 = arith.select %216, %206, %202 : vector<1x8x1xi1>, vector<1x8x1xf32>
    %218 = arith.select %216, %203, %206 : vector<1x8x1xi1>, vector<1x8x1xf32>
    %c14_i32 = arith.constant 14 : i32
    %219 = arith.addf %217, %218 : vector<1x8x1xf32>
    %cst_80 = arith.constant 5.000000e-01 : f32
    %220 = vector.broadcast %cst_80 : f32 to vector<1x8x1xf32>
    %221 = arith.mulf %220, %219 : vector<1x8x1xf32>
    %222 = vector.broadcast %221 : vector<1x8x1xf32> to vector<1x8x16xf32>
    %223 = arith.subf %4, %222 : vector<1x8x16xf32>
    %cst_81 = arith.constant 0.000000e+00 : f32
    %224 = vector.broadcast %cst_81 : f32 to vector<1x8x16xf32>
    %225 = arith.maximumf %223, %224 : vector<1x8x16xf32>
    %cst_82 = arith.constant dense<0.000000e+00> : vector<1x8xf32>
    %226 = vector.multi_reduction <add>, %225, %cst_82 [2] : vector<1x8x16xf32> to vector<1x8xf32>
    %227 = vector.shape_cast %226 : vector<1x8xf32> to vector<1x8x1xf32>
    %cst_83 = arith.constant 1.000000e+00 : f32
    %228 = vector.broadcast %cst_83 : f32 to vector<1x8x1xf32>
    %229 = arith.subf %227, %228 : vector<1x8x1xf32>
    %cst_84 = arith.constant 0.000000e+00 : f32
    %230 = vector.broadcast %cst_84 : f32 to vector<1x8x1xf32>
    %231 = arith.cmpf ogt, %229, %230 : vector<1x8x1xf32>
    %232 = arith.select %231, %221, %217 : vector<1x8x1xi1>, vector<1x8x1xf32>
    %233 = arith.select %231, %218, %221 : vector<1x8x1xi1>, vector<1x8x1xf32>
    %c15_i32 = arith.constant 15 : i32
    %234 = arith.addf %232, %233 : vector<1x8x1xf32>
    %cst_85 = arith.constant 5.000000e-01 : f32
    %235 = vector.broadcast %cst_85 : f32 to vector<1x8x1xf32>
    %236 = arith.mulf %235, %234 : vector<1x8x1xf32>
    %237 = vector.broadcast %236 : vector<1x8x1xf32> to vector<1x8x16xf32>
    %238 = arith.subf %4, %237 : vector<1x8x16xf32>
    %cst_86 = arith.constant 0.000000e+00 : f32
    %239 = vector.broadcast %cst_86 : f32 to vector<1x8x16xf32>
    %240 = arith.maximumf %238, %239 : vector<1x8x16xf32>
    %cst_87 = arith.constant dense<0.000000e+00> : vector<1x8xf32>
    %241 = vector.multi_reduction <add>, %240, %cst_87 [2] : vector<1x8x16xf32> to vector<1x8xf32>
    %242 = vector.shape_cast %241 : vector<1x8xf32> to vector<1x8x1xf32>
    %cst_88 = arith.constant 1.000000e+00 : f32
    %243 = vector.broadcast %cst_88 : f32 to vector<1x8x1xf32>
    %244 = arith.subf %242, %243 : vector<1x8x1xf32>
    %cst_89 = arith.constant 0.000000e+00 : f32
    %245 = vector.broadcast %cst_89 : f32 to vector<1x8x1xf32>
    %246 = arith.cmpf ogt, %244, %245 : vector<1x8x1xf32>
    %247 = arith.select %246, %236, %232 : vector<1x8x1xi1>, vector<1x8x1xf32>
    %248 = arith.select %246, %233, %236 : vector<1x8x1xi1>, vector<1x8x1xf32>
    %c16_i32 = arith.constant 16 : i32
    %249 = arith.addf %247, %248 : vector<1x8x1xf32>
    %cst_90 = arith.constant 5.000000e-01 : f32
    %250 = vector.broadcast %cst_90 : f32 to vector<1x8x1xf32>
    %251 = arith.mulf %250, %249 : vector<1x8x1xf32>
    %252 = vector.broadcast %251 : vector<1x8x1xf32> to vector<1x8x16xf32>
    %253 = arith.subf %4, %252 : vector<1x8x16xf32>
    %cst_91 = arith.constant 0.000000e+00 : f32
    %254 = vector.broadcast %cst_91 : f32 to vector<1x8x16xf32>
    %255 = arith.maximumf %253, %254 : vector<1x8x16xf32>
    %cst_92 = arith.constant dense<0.000000e+00> : vector<1x8xf32>
    %256 = vector.multi_reduction <add>, %255, %cst_92 [2] : vector<1x8x16xf32> to vector<1x8xf32>
    %257 = vector.shape_cast %256 : vector<1x8xf32> to vector<1x8x1xf32>
    %cst_93 = arith.constant 1.000000e+00 : f32
    %258 = vector.broadcast %cst_93 : f32 to vector<1x8x1xf32>
    %259 = arith.subf %257, %258 : vector<1x8x1xf32>
    %cst_94 = arith.constant 0.000000e+00 : f32
    %260 = vector.broadcast %cst_94 : f32 to vector<1x8x1xf32>
    %261 = arith.cmpf ogt, %259, %260 : vector<1x8x1xf32>
    %262 = arith.select %261, %251, %247 : vector<1x8x1xi1>, vector<1x8x1xf32>
    %263 = arith.select %261, %248, %251 : vector<1x8x1xi1>, vector<1x8x1xf32>
    %c17_i32 = arith.constant 17 : i32
    %264 = arith.addf %262, %263 : vector<1x8x1xf32>
    %cst_95 = arith.constant 5.000000e-01 : f32
    %265 = vector.broadcast %cst_95 : f32 to vector<1x8x1xf32>
    %266 = arith.mulf %265, %264 : vector<1x8x1xf32>
    %267 = vector.broadcast %266 : vector<1x8x1xf32> to vector<1x8x16xf32>
    %268 = arith.subf %4, %267 : vector<1x8x16xf32>
    %cst_96 = arith.constant 0.000000e+00 : f32
    %269 = vector.broadcast %cst_96 : f32 to vector<1x8x16xf32>
    %270 = arith.maximumf %268, %269 : vector<1x8x16xf32>
    %cst_97 = arith.constant dense<0.000000e+00> : vector<1x8xf32>
    %271 = vector.multi_reduction <add>, %270, %cst_97 [2] : vector<1x8x16xf32> to vector<1x8xf32>
    %272 = vector.shape_cast %271 : vector<1x8xf32> to vector<1x8x1xf32>
    %cst_98 = arith.constant 1.000000e+00 : f32
    %273 = vector.broadcast %cst_98 : f32 to vector<1x8x1xf32>
    %274 = arith.subf %272, %273 : vector<1x8x1xf32>
    %cst_99 = arith.constant 0.000000e+00 : f32
    %275 = vector.broadcast %cst_99 : f32 to vector<1x8x1xf32>
    %276 = arith.cmpf ogt, %274, %275 : vector<1x8x1xf32>
    %277 = arith.select %276, %266, %262 : vector<1x8x1xi1>, vector<1x8x1xf32>
    %278 = arith.select %276, %263, %266 : vector<1x8x1xi1>, vector<1x8x1xf32>
    %279 = arith.addf %277, %278 : vector<1x8x1xf32>
    %cst_100 = arith.constant 5.000000e-01 : f32
    %280 = vector.broadcast %cst_100 : f32 to vector<1x8x1xf32>
    %281 = arith.mulf %280, %279 : vector<1x8x1xf32>
    %282 = vector.broadcast %281 : vector<1x8x1xf32> to vector<1x8x16xf32>
    %283 = arith.cmpf ogt, %4, %282 : vector<1x8x16xf32>
    %284 = arith.extui %283 : vector<1x8x16xi1> to vector<1x8x16xi32>
    %285 = arith.sitofp %284 : vector<1x8x16xi32> to vector<1x8x16xf32>
    %cst_101 = arith.constant dense<0.000000e+00> : vector<1x8xf32>
    %286 = vector.multi_reduction <add>, %285, %cst_101 [2] : vector<1x8x16xf32> to vector<1x8xf32>
    %287 = vector.shape_cast %286 : vector<1x8xf32> to vector<1x8x1xf32>
    %cst_102 = arith.constant 1.000000e+00 : f32
    %288 = vector.broadcast %cst_102 : f32 to vector<1x8x1xf32>
    %289 = arith.maximumf %287, %288 : vector<1x8x1xf32>
    %290 = arith.mulf %4, %285 : vector<1x8x16xf32>
    %cst_103 = arith.constant dense<0.000000e+00> : vector<1x8xf32>
    %291 = vector.multi_reduction <add>, %290, %cst_103 [2] : vector<1x8x16xf32> to vector<1x8xf32>
    %292 = vector.shape_cast %291 : vector<1x8xf32> to vector<1x8x1xf32>
    %cst_104 = arith.constant 1.000000e+00 : f32
    %293 = vector.broadcast %cst_104 : f32 to vector<1x8x1xf32>
    %294 = arith.subf %292, %293 : vector<1x8x1xf32>
    %295 = arith.divf %294, %289 : vector<1x8x1xf32>
    %296 = arith.maximumf %277, %295 : vector<1x8x1xf32>
    %297 = arith.minimumf %278, %296 : vector<1x8x1xf32>
    %298 = vector.broadcast %297 : vector<1x8x1xf32> to vector<1x8x16xf32>
    %299 = arith.subf %4, %298 : vector<1x8x16xf32>
    %cst_105 = arith.constant 0.000000e+00 : f32
    %300 = vector.broadcast %cst_105 : f32 to vector<1x8x16xf32>
    %301 = arith.maximumf %299, %300 : vector<1x8x16xf32>
    %c0_106 = arith.constant 0 : index
    %c0_107 = arith.constant 0 : index
    %c0_108 = arith.constant 0 : index
    %302 = vector.load %arg6[%c0_106, %c0_107, %c0_108] : memref<1x8x16xf32, #tpu.memory_space<vmem>>, vector<1x8x16xf32>
    tpu.vector_store %arg6[%c0_106, %c0_107, %c0_108], %301 {strides = array<i32>} : memref<1x8x16xf32, #tpu.memory_space<vmem>>, vector<1x8x16xf32>,
    %c0_109 = arith.constant 0 : index
    %c0_110 = arith.constant 0 : index
    %c0_111 = arith.constant 0 : index
    %303 = vector.load %arg3[%c0_109, %c0_110, %c0_111] : memref<1x8x16xf32, #tpu.memory_space<vmem>>, vector<1x8x16xf32>
    %304 = arith.mulf %301, %303 : vector<1x8x16xf32>
    %cst_112 = arith.constant dense<0.000000e+00> : vector<1x8xf32>
    %305 = vector.multi_reduction <add>, %304, %cst_112 [2] : vector<1x8x16xf32> to vector<1x8xf32>
    %306 = vector.shape_cast %305 : vector<1x8xf32> to vector<1x1x8xf32>
    %c0_113 = arith.constant 0 : index
    %c0_114 = arith.constant 0 : index
    %c0_115 = arith.constant 0 : index
    %307 = vector.load %arg5[%c0_113, %c0_114, %c0_115] : memref<1x1x8xf32, #tpu.memory_space<vmem>>, vector<1x1x8xf32>
    tpu.vector_store %arg5[%c0_113, %c0_114, %c0_115], %306 {strides = array<i32>} : memref<1x1x8xf32, #tpu.memory_space<vmem>>, vector<1x1x8xf32>,
    return
  }
  func.func @transform_0(%arg0: i32) -> (i32, i32, i32) {
    %c0_i32 = arith.constant 0 : i32
    %c0_i32_0 = arith.constant 0 : i32
    %c0_i32_1 = arith.constant 0 : i32
    return %arg0, %c0_i32, %c0_i32_0 : i32, i32, i32
  }
  func.func @transform_1(%arg0: i32) -> (i32, i32, i32) {
    %c0_i32 = arith.constant 0 : i32
    %c0_i32_0 = arith.constant 0 : i32
    %c0_i32_1 = arith.constant 0 : i32
    return %arg0, %c0_i32, %c0_i32_0 : i32, i32, i32
  }
  func.func @transform_2(%arg0: i32) -> (i32, i32, i32) {
    %c0_i32 = arith.constant 0 : i32
    %c0_i32_0 = arith.constant 0 : i32
    %c0_i32_1 = arith.constant 0 : i32
    return %arg0, %c0_i32, %c0_i32_0 : i32, i32, i32
  }
  func.func @transform_3(%arg0: i32) -> (i32, i32) {
    %c0_i32 = arith.constant 0 : i32
    %c0_i32_0 = arith.constant 0 : i32
    %c0_i32_1 = arith.constant 0 : i32
    return %c0_i32, %c0_i32_0 : i32, i32
  }
  func.func @transform_4(%arg0: i32) -> (i32, i32, i32) {
    %c0_i32 = arith.constant 0 : i32
    %c0_i32_0 = arith.constant 0 : i32
    %c0_i32_1 = arith.constant 0 : i32
    return %arg0, %c0_i32, %c0_i32_0 : i32, i32, i32
  }
  func.func @transform_5(%arg0: i32) -> (i32, i32, i32) {
    %c0_i32 = arith.constant 0 : i32
    %c0_i32_0 = arith.constant 0 : i32
    %c0_i32_1 = arith.constant 0 : i32
    return %arg0, %c0_i32, %c0_i32_0 : i32, i32, i32
  }
}

</mosaic_0001>

<llo_original>
// kernel: group_select_layer.1
$region0: #{group_select_layer.1}
  #allocation0 [shape = 'u32[]', space=smem, size = 0x4, offset = 0x4, fixed_abs, tag = 'smem constant byte address 0x4 - core index']
  #allocation1 [shape = 'u32[144,128]{1,0:T(1,128)}', space=vmem, size = 0x12000, scoped, tag = 'internal scratch']
  %s0 = inlined_call_operand.vmem [shape: f32[2,8,32], index: 0, kind: input, shape index: {}]
  %s1 = inlined_call_operand.vmem [shape: f32[2,16,32], index: 1, kind: input, shape index: {}]
  %s2 = inlined_call_operand.vmem [shape: f32[2,8,16], index: 2, kind: input, shape index: {}]
  %s3 = inlined_call_operand.vmem [shape: f32[32,32], index: 3, kind: input, shape index: {}]
  %s4 = inlined_call_operand.hbm [shape: f32[2,1,8], index: 4, kind: output, shape index: {0}]
  %s5 = inlined_call_operand.hbm [shape: f32[2,8,16], index: 5, kind: output, shape index: {1}]
  %6 = xla_tuple %s4, %s5
  %s7 = sld [smem:[#allocation0]]
  $region57: #{group_select_layer.1} parent=0
    _
  %s9 = ssub.s32 1, %s7
  %s10 = scalar_select 0, %s9, %s7
  $region1: #{group_select_layer.1} parent=0
    #allocation2 [shape = 'u8[1024]{0}', space=vmem, size = 0x400, scoped, tag = 'output window, operand 0']
    #allocation3 [shape = 's32[2]{0}', space=sflag, size = 0x8, scoped, tag = 'scoped memory for group_select_layer.1']
    #allocation4 [shape = 'u8[8192]{0}', space=vmem, size = 0x2000, scoped, tag = 'output window, operand 1']
    #allocation5 [shape = 's32[2]{0}', space=sflag, size = 0x8, scoped, tag = 'scoped memory for group_select_layer.1']
    %11 = vsyncpa [#allocation3], 0
    %s12 = scalar_lea.sflag [#allocation3], 1
    %13 = vsyncpa %s12, 0
    %14 = vsyncpa [#allocation5], 0
    %s15 = scalar_lea.sflag [#allocation5], 1
    %16 = vsyncpa %s15, 0
    loop: start=0, step=1, limit=4
    $region2: #{group_select_layer.1} parent=1 // loop_pre_header
      _
    $region3: #{group_select_layer.1} parent=1 // loop_header
      %s18 = sphi 0, %s22
      %p19 = scmp.ge.s32.totalorder %s18, 4
      %s28 = sphi 0, %s30
      %s31 = sphi 0, %s28
      %s32 = sphi 0, %s31
      %s48 = sphi 0, %s32
      %s54 = sphi 0, %s56
      %s57 = sphi 0, %s54
      %s58 = sphi 0, %s57
      %s74 = sphi 0, %s58
      %s80 = sphi 0, %s82
      %s83 = sphi 0, %s80
      %s84 = sphi 0, %s83
      %s100 = sphi 0, %s84
      %s104 = sphi 0, %s104
      %s106 = sphi 0, %s104
      %s107 = sphi 0, %s106
      %s121 = sphi 0, %s107
      %s127 = sphi 0, %s129
      %s130 = sphi 0, %s127
      %s131 = sphi 0, %s130
      %s147 = sphi 0, %s131
      %s153 = sphi 0, %s155
      %s156 = sphi 0, %s153
      %s157 = sphi 0, %s156
      %s173 = sphi 0, %s157
    $region4: #{group_select_layer.1} parent=1 // loop_header_branch
      %21 = sbr.rel (%p19) target = $region8
    $region5: #{group_select_layer.1} parent=1 // loop_body
      %s23 = ssub.s32 %s18, 1
      %s24 = ssub.s32 %s18, 2
      %s25 = sadd.s32 %s18, 1
      %s26 = ssub.s32 %s18, %s25
      %p27 = scmp.eq.s32.totalorder %s26, 0
      %s29 = sadd.s32 %s28, 1
      %s30 = scalar_select %p27, %s28, %s29
      %p33 = pneg %p27
      %p34 = scmp.eq.s32.totalorder %s18, 1
      %p35 = por %p33, %p34
      %p36 = scmp.ne.s32.totalorder %s28, %s31
      %p37 = scmp.eq.s32.totalorder %s18, 0
      %p38 = por %p36, %p37
      %p39 = scmp.ne.s32.totalorder %s28, %s31
      %p40 = scmp.eq.s32.totalorder %s23, 1
      %p41 = por %p39, %p40
      %p42 = scmp.ne.s32.totalorder %s31, %s32
      %p43 = scmp.eq.s32.totalorder %s23, 0
      %p44 = por %p42, %p43
      %p45 = scmp.ne.s32.totalorder %s31, %s32
      %p46 = scmp.eq.s32.totalorder %s24, 1
      %p47 = por %p45, %p46
      %p49 = scmp.ne.s32.totalorder %s32, %s48
      %p50 = scmp.eq.s32.totalorder %s24, 0
      %p51 = por %p49, %p50
      %s52 = ssub.s32 %s18, %s25
      %p53 = scmp.eq.s32.totalorder %s52, 0
      %s55 = sadd.s32 %s54, 1
      %s56 = scalar_select %p53, %s54, %s55
      %p59 = pneg %p53
      %p60 = scmp.eq.s32.totalorder %s18, 1
      %p61 = por %p59, %p60
      %p62 = scmp.ne.s32.totalorder %s54, %s57
      %p63 = scmp.eq.s32.totalorder %s18, 0
      %p64 = por %p62, %p63
      %p65 = scmp.ne.s32.totalorder %s54, %s57
      %p66 = scmp.eq.s32.totalorder %s23, 1
      %p67 = por %p65, %p66
      %p68 = scmp.ne.s32.totalorder %s57, %s58
      %p69 = scmp.eq.s32.totalorder %s23, 0
      %p70 = por %p68, %p69
      %p71 = scmp.ne.s32.totalorder %s57, %s58
      %p72 = scmp.eq.s32.totalorder %s24, 1
      %p73 = por %p71, %p72
      %p75 = scmp.ne.s32.totalorder %s58, %s74
      %p76 = scmp.eq.s32.totalorder %s24, 0
      %p77 = por %p75, %p76
      %s78 = ssub.s32 %s18, %s25
      %p79 = scmp.eq.s32.totalorder %s78, 0
      %s81 = sadd.s32 %s80, 1
      %s82 = scalar_select %p79, %s80, %s81
      %p85 = pneg %p79
      %p86 = scmp.eq.s32.totalorder %s18, 1
      %p87 = por %p85, %p86
      %p88 = scmp.ne.s32.totalorder %s80, %s83
      %p89 = scmp.eq.s32.totalorder %s18, 0
      %p90 = por %p88, %p89
      %p91 = scmp.ne.s32.totalorder %s80, %s83
      %p92 = scmp.eq.s32.totalorder %s23, 1
      %p93 = por %p91, %p92
      %p94 = scmp.ne.s32.totalorder %s83, %s84
      %p95 = scmp.eq.s32.totalorder %s23, 0
      %p96 = por %p94, %p95
      %p97 = scmp.ne.s32.totalorder %s83, %s84
      %p98 = scmp.eq.s32.totalorder %s24, 1
      %p99 = por %p97, %p98
      %p101 = scmp.ne.s32.totalorder %s84, %s100
      %p102 = scmp.eq.s32.totalorder %s24, 0
      %p103 = por %p101, %p102
      %s105 = sadd.s32 %s104, 1
      %p108 = scmp.eq.s32.totalorder %s18, 1
      %p109 = scmp.ne.s32.totalorder %s104, %s106
      %p110 = scmp.eq.s32.totalorder %s18, 0
      %p111 = por %p109, %p110
      %p112 = scmp.ne.s32.totalorder %s104, %s106
      %p113 = scmp.eq.s32.totalorder %s23, 1
      %p114 = por %p112, %p113
      %p115 = scmp.ne.s32.totalorder %s106, %s107
      %p116 = scmp.eq.s32.totalorder %s23, 0
      %p117 = por %p115, %p116
      %p118 = scmp.ne.s32.totalorder %s106, %s107
      %p119 = scmp.eq.s32.totalorder %s24, 1
      %p120 = por %p118, %p119
      %p122 = scmp.ne.s32.totalorder %s107, %s121
      %p123 = scmp.eq.s32.totalorder %s24, 0
      %p124 = por %p122, %p123
      %s125 = ssub.s32 %s18, %s25
      %p126 = scmp.eq.s32.totalorder %s125, 0
      %s128 = sadd.s32 %s127, 1
      %s129 = scalar_select %p126, %s127, %s128
      %p132 = pneg %p126
      %p133 = scmp.eq.s32.totalorder %s18, 1
      %p134 = por %p132, %p133
      %p135 = scmp.ne.s32.totalorder %s127, %s130
      %p136 = scmp.eq.s32.totalorder %s18, 0
      %p137 = por %p135, %p136
      %p138 = scmp.ne.s32.totalorder %s127, %s130
      %p139 = scmp.eq.s32.totalorder %s23, 1
      %p140 = por %p138, %p139
      %p141 = scmp.ne.s32.totalorder %s130, %s131
      %p142 = scmp.eq.s32.totalorder %s23, 0
      %p143 = por %p141, %p142
      %p144 = scmp.ne.s32.totalorder %s130, %s131
      %p145 = scmp.eq.s32.totalorder %s24, 1
      %p146 = por %p144, %p145
      %p148 = scmp.ne.s32.totalorder %s131, %s147
      %p149 = scmp.eq.s32.totalorder %s24, 0
      %p150 = por %p148, %p149
      %s151 = ssub.s32 %s18, %s25
      %p152 = scmp.eq.s32.totalorder %s151, 0
      %s154 = sadd.s32 %s153, 1
      %s155 = scalar_select %p152, %s153, %s154
      %p158 = pneg %p152
      %p159 = scmp.eq.s32.totalorder %s18, 1
      %p160 = por %p158, %p159
      %p161 = scmp.ne.s32.totalorder %s153, %s156
      %p162 = scmp.eq.s32.totalorder %s18, 0
      %p163 = por %p161, %p162
      %p164 = scmp.ne.s32.totalorder %s153, %s156
      %p165 = scmp.eq.s32.totalorder %s23, 1
      %p166 = por %p164, %p165
      %p167 = scmp.ne.s32.totalorder %s156, %s157
      %p168 = scmp.eq.s32.totalorder %s23, 0
      %p169 = por %p167, %p168
      %p170 = scmp.ne.s32.totalorder %s156, %s157
      %p171 = scmp.eq.s32.totalorder %s24, 1
      %p172 = por %p170, %p171
      %p174 = scmp.ne.s32.totalorder %s157, %s173
      %p175 = scmp.eq.s32.totalorder %s24, 0
      %p176 = por %p174, %p175
      %p177 = scmp.le.s32.totalorder 1, %s18
      %p178 = scmp.lt.s32.totalorder %s18, 3
      %p179 = pnand %p177, %p178
      %p180 = pneg %p179
      // Predicated region
      $region9: #{group_select_layer.1} parent=5 // pred_check
        _
      $region10: #{group_select_layer.1} parent=5 // pred_check_branch
        %182 = sbr.rel (%p179) target = $region12
      $region11: #{group_select_layer.1} parent=5 // pred_region
        %s183 = ssub.s32 %s18, 1
        // Predicated region
        $region13: #{group_select_layer.1} parent=11 // pred_check
          %p184 = pneg %p117
        $region14: #{group_select_layer.1} parent=11 // pred_check_branch
          %186 = sbr.rel (%p184) target = $region16
        $region15: #{group_select_layer.1} parent=11 // pred_region
          _
        $region16: #{group_select_layer.1} parent=11 // pred_fallthru
          _
      $region12: #{group_select_layer.1} parent=5 // pred_fallthru
        _
      %p187 = scmp.lt.s32.totalorder %s18, 2
      // Predicated region
      $region17: #{group_select_layer.1} parent=5 // pred_check
        %p188 = pneg %p187
      $region18: #{group_select_layer.1} parent=5 // pred_check_branch
        %190 = sbr.rel (%p188) target = $region20
      $region19: #{group_select_layer.1} parent=5 // pred_region
        // Predicated region
        $region21: #{group_select_layer.1} parent=19 // pred_check
          %p191 = pneg %p38
        $region22: #{group_select_layer.1} parent=19 // pred_check_branch
          %193 = sbr.rel (%p191) target = $region24
        $region23: #{group_select_layer.1} parent=19 // pred_region
          %p194 = scmp.lt.s32.totalorder %s18, 1
          %s195 = scalar_select %p194, %s18, 1
          %s196 = smul.addr %s195, 8
          %s197 = scalar_lea.vmem %s0, %s196
        $region24: #{group_select_layer.1} parent=19 // pred_fallthru
          _
        // Predicated region
        $region25: #{group_select_layer.1} parent=19 // pred_check
          %p198 = pneg %p64
        $region26: #{group_select_layer.1} parent=19 // pred_check_branch
          %200 = sbr.rel (%p198) target = $region28
        $region27: #{group_select_layer.1} parent=19 // pred_region
          %p201 = scmp.lt.s32.totalorder %s18, 1
          %s202 = scalar_select %p201, %s18, 1
          %s203 = smul.addr %s202, 2
          %s204 = smul.addr %s203, 8
          %s205 = scalar_lea.vmem %s1, %s204
        $region28: #{group_select_layer.1} parent=19 // pred_fallthru
          _
        // Predicated region
        $region29: #{group_select_layer.1} parent=19 // pred_check
          %p206 = pneg %p90
        $region30: #{group_select_layer.1} parent=19 // pred_check_branch
          %208 = sbr.rel (%p206) target = $region32
        $region31: #{group_select_layer.1} parent=19 // pred_region
          %p209 = scmp.lt.s32.totalorder %s18, 1
          %s210 = scalar_select %p209, %s18, 1
          %s211 = smul.addr %s210, 8
          %s212 = scalar_lea.vmem %s2, %s211
        $region32: #{group_select_layer.1} parent=19 // pred_fallthru
          _
      $region20: #{group_select_layer.1} parent=5 // pred_fallthru
        _
      %p213 = scmp.le.s32.totalorder 1, %s18
      %p214 = scmp.lt.s32.totalorder %s18, 3
      %p215 = pnand %p213, %p214
      %p216 = pneg %p215
      // Predicated region
      $region33: #{group_select_layer.1} parent=5 // pred_check
        _
      $region34: #{group_select_layer.1} parent=5 // pred_check_branch
        %218 = sbr.rel (%p215) target = $region36
      $region35: #{group_select_layer.1} parent=5 // pred_region
        %s219 = ssub.s32 %s18, 1
        %p220 = scmp.lt.s32.totalorder %s23, 1
        %s221 = scalar_select %p220, %s23, 1
        %s222 = smul.addr %s221, 8
        %s223 = scalar_lea.vmem %s0, %s222
        %p224 = pneg %p44
        %p225 = pneg %p41
        %p226 = scmp.lt.s32.totalorder %s23, 1
        %s227 = scalar_select %p226, %s23, 1
        %s228 = smul.addr %s227, 2
        %s229 = smul.addr %s228, 8
        %s230 = scalar_lea.vmem %s1, %s229
        %p231 = pneg %p70
        %p232 = pneg %p67
        %p233 = scmp.lt.s32.totalorder %s23, 1
        %s234 = scalar_select %p233, %s23, 1
        %s235 = smul.addr %s234, 8
        %s236 = scalar_lea.vmem %s2, %s235
        %p237 = pneg %p96
        %p238 = pneg %p93
        %p239 = pneg %p117
        %p240 = pneg %p114
        %p241 = pneg %p143
        %p242 = pneg %p140
        %s243 = sand.u32 %s130, 1
        %s244 = scalar_lea.sflag [#allocation3], %s243
        %s245 = sand.u32 %s130, 1
        %s246 = scalar_lea.vmem [#allocation2], %s245
        %p247 = pneg %p169
        %p248 = pneg %p166
        %s249 = sand.u32 %s156, 1
        %s250 = scalar_lea.sflag [#allocation5], %s249
        %s251 = sand.u32 %s156, 1
        %s252 = smul.addr %s251, 8
        %s253 = scalar_lea.vmem [#allocation4], %s252
        %p254 = scmp.lt.s32.totalorder %s23, 1
        %s255 = scalar_select %p254, %s23, 1
        %s256 = smul.addr %s255, 8
        %s257 = scalar_lea.vmem %s0, %s256
        %p258 = scmp.lt.s32.totalorder %s23, 1
        %s259 = scalar_select %p258, %s23, 1
        %s260 = smul.addr %s259, 2
        %s261 = smul.addr %s260, 8
        %s262 = scalar_lea.vmem %s1, %s261
        %p263 = scmp.lt.s32.totalorder %s23, 1
        %s264 = scalar_select %p263, %s23, 1
        %s265 = smul.addr %s264, 8
        %s266 = scalar_lea.vmem %s2, %s265
        %v267 = vld [vmem:[%s262] sm:$0xff]
        %v268 = vld [vmem:[%s262 + $0x8] sm:$0xff]
        %v269 = vld [vmem:[%s3] sm:$0xff]
        %v270 = vld [vmem:[%s3 + $0x8] sm:$0xff]
        %v271 = vld [vmem:[%s3 + $0x10] sm:$0xff]
        %v272 = vld [vmem:[%s3 + $0x18] sm:$0xff]
        %v273 = vld [vmem:[%s257] sm:$0xff]
        %vm274 = vcmask 261120
        %v276 = vsel %vm274, %v273, 0
        %278 = vmatprep.subr.mxu0 0.0
        %279 = vmatpush1.msra.mxu0 %v269
        %280 = vmatprep.subr.mxu0 0.0
        %281 = vmatpush1.msra.mxu0 %v270
        %282 = vmatprep.subr.mxu0 0.0
        %283 = vmatpush1.msra.mxu0 %v271
        %284 = vmatprep.subr.mxu0 0.0
        %285 = vmatpush1.msra.mxu0 %v272
        %286 = vmatprep.subr.mxu0 0.0
        %287 = vmatpush1.msra.mxu0 0.0
        %288 = vmatprep.subr.mxu0 0.0
        %289 = vmatpush1.msra.mxu0 0.0
        %290 = vmatprep.subr.mxu0 0.0
        %291 = vmatpush1.msra.mxu0 0.0
        %292 = vmatprep.subr.mxu0 0.0
        %293 = vmatpush1.msra.mxu0 0.0
        %294 = vmatprep.subr.mxu0 0.0
        %295 = vmatpush1.msra.mxu0 0.0
        %296 = vmatprep.subr.mxu0 0.0
        %297 = vmatpush1.msra.mxu0 0.0
        %298 = vmatprep.subr.mxu0 0.0
        %299 = vmatpush1.msra.mxu0 0.0
        %300 = vmatprep.subr.mxu0 0.0
        %301 = vmatpush1.msra.mxu0 0.0
        %302 = vmatprep.subr.mxu0 0.0
        %303 = vmatpush1.msra.mxu0 0.0
        %304 = vmatprep.subr.mxu0 0.0
        %305 = vmatpush1.msra.mxu0 0.0
        %306 = vmatprep.subr.mxu0 0.0
        %307 = vmatpush1.msra.mxu0 0.0
        %308 = vmatprep.subr.mxu0 0.0
        %309 = vmatpush1.msra.mxu0 0.0
        %310 = vmatprep.subr.mxu0 0.0
        %311 = vmatpush1.msra.mxu0 0.0
        %312 = vmatprep.subr.mxu0 0.0
        %313 = vmatpush1.msra.mxu0 0.0
        %314 = vmatprep.subr.mxu0 0.0
        %315 = vmatpush1.msra.mxu0 0.0
        %316 = vmatprep.subr.mxu0 0.0
        %317 = vmatpush1.msra.mxu0 0.0
        %318 = vmatprep.subr.mxu0 0.0
        %319 = vmatpush1.msra.mxu0 0.0
        %320 = vmatprep.subr.mxu0 0.0
        %321 = vmatpush1.msra.mxu0 0.0
        %322 = vmatprep.subr.mxu0 0.0
        %323 = vmatpush1.msra.mxu0 0.0
        %324 = vmatprep.subr.mxu0 0.0
        %325 = vmatpush1.msra.mxu0 0.0
        %326 = vmatprep.subr.mxu0 0.0
        %327 = vmatpush1.msra.mxu0 0.0
        %328 = vmatprep.subr.mxu0 0.0
        %329 = vmatpush1.msra.mxu0 0.0
        %330 = vmatprep.subr.mxu0 0.0
        %331 = vmatpush1.msra.mxu0 0.0
        %332 = vmatprep.subr.mxu0 0.0
        %333 = vmatpush1.msra.mxu0 0.0
        %334 = vmatprep.subr.mxu0 0.0
        %335 = vmatpush1.msra.mxu0 0.0
        %336 = vmatprep.subr.mxu0 0.0
        %337 = vmatpush1.msra.mxu0 0.0
        %338 = vmatprep.subr.mxu0 0.0
        %339 = vmatpush1.msra.mxu0 0.0
        %340 = vmatprep.subr.mxu0 0.0
        %341 = vmatpush1.msra.mxu0 0.0
        %342 = vmatprep.mubr.f32.mxu0 0.0
        %343 = vmatmul.mubr.f32.gmra.mrb[0].mxu0 %v276
        %v344 = vpop.f32.mrb[0].mxu0
        %v345 = vadd.f32 0.0, %v344
        %v346 = vpop.f32.mrb[0].mxu0
        %347 = vdwg.mxu0
        %v349 = vsel %vm274, %v345, 0
        %v352 = vsel %vm274, %v267, 0
        %v355 = vsel %vm274, %v268, 0
        %357 = vmatprep.subr.mxu0 0.0
        %358 = vmatpush1.xpose.msra.mxu0 %v352
        %359 = vmatprep.subr.mxu0 0.0
        %360 = vmatpush1.xpose.msra.mxu0 %v355
        %361 = vmatprep.subr.mxu0 0.0
        %362 = vmatpush1.xpose.msra.mxu0 0.0
        %363 = vmatprep.subr.mxu0 0.0
        %364 = vmatpush1.xpose.msra.mxu0 0.0
        %365 = vmatprep.subr.mxu0 0.0
        %366 = vmatpush1.xpose.msra.mxu0 0.0
        %367 = vmatprep.subr.mxu0 0.0
        %368 = vmatpush1.xpose.msra.mxu0 0.0
        %369 = vmatprep.subr.mxu0 0.0
        %370 = vmatpush1.xpose.msra.mxu0 0.0
        %371 = vmatprep.subr.mxu0 0.0
        %372 = vmatpush1.xpose.msra.mxu0 0.0
        %373 = vmatprep.subr.mxu0 0.0
        %374 = vmatpush1.xpose.msra.mxu0 0.0
        %375 = vmatprep.subr.mxu0 0.0
        %376 = vmatpush1.xpose.msra.mxu0 0.0
        %377 = vmatprep.subr.mxu0 0.0
        %378 = vmatpush1.xpose.msra.mxu0 0.0
        %379 = vmatprep.subr.mxu0 0.0
        %380 = vmatpush1.xpose.msra.mxu0 0.0
        %381 = vmatprep.subr.mxu0 0.0
        %382 = vmatpush1.xpose.msra.mxu0 0.0
        %383 = vmatprep.subr.mxu0 0.0
        %384 = vmatpush1.xpose.msra.mxu0 0.0
        %385 = vmatprep.subr.mxu0 0.0
        %386 = vmatpush1.xpose.msra.mxu0 0.0
        %387 = vmatprep.subr.mxu0 0.0
        %388 = vmatpush1.xpose.msra.mxu0 0.0
        %389 = vmatprep.subr.mxu0 0.0
        %390 = vmatpush1.xpose.msra.mxu0 0.0
        %391 = vmatprep.subr.mxu0 0.0
        %392 = vmatpush1.xpose.msra.mxu0 0.0
        %393 = vmatprep.subr.mxu0 0.0
        %394 = vmatpush1.xpose.msra.mxu0 0.0
        %395 = vmatprep.subr.mxu0 0.0
        %396 = vmatpush1.xpose.msra.mxu0 0.0
        %397 = vmatprep.subr.mxu0 0.0
        %398 = vmatpush1.xpose.msra.mxu0 0.0
        %399 = vmatprep.subr.mxu0 0.0
        %400 = vmatpush1.xpose.msra.mxu0 0.0
        %401 = vmatprep.subr.mxu0 0.0
        %402 = vmatpush1.xpose.msra.mxu0 0.0
        %403 = vmatprep.subr.mxu0 0.0
        %404 = vmatpush1.xpose.msra.mxu0 0.0
        %405 = vmatprep.subr.mxu0 0.0
        %406 = vmatpush1.xpose.msra.mxu0 0.0
        %407 = vmatprep.subr.mxu0 0.0
        %408 = vmatpush1.xpose.msra.mxu0 0.0
        %409 = vmatprep.subr.mxu0 0.0
        %410 = vmatpush1.xpose.msra.mxu0 0.0
        %411 = vmatprep.subr.mxu0 0.0
        %412 = vmatpush1.xpose.msra.mxu0 0.0
        %413 = vmatprep.subr.mxu0 0.0
        %414 = vmatpush1.xpose.msra.mxu0 0.0
        %415 = vmatprep.subr.mxu0 0.0
        %416 = vmatpush1.xpose.msra.mxu0 0.0
        %417 = vmatprep.subr.mxu0 0.0
        %418 = vmatpush1.xpose.msra.mxu0 0.0
        %419 = vmatprep.subr.mxu0 0.0
        %420 = vmatpush1.xpose.msra.mxu0 0.0
        %421 = vmatprep.mubr.f32.mxu0 0.0
        %422 = vmatmul.mubr.f32.gmra.mrb[0].mxu0 %v349
        %v423 = vpop.f32.mrb[0].mxu0
        %v424 = vadd.f32 0.0, %v423
        %v425 = vpop.f32.mrb[0].mxu0
        %426 = vdwg.mxu0
        %vm427 = vcmask 130048
        %v428 = vsel %vm427, %v424, -inf
        %429 = vmax.xlane.f32.xlu0 %v428
        %v430 = vpop.xlane.xlu0 %429
        %v431 = vsub.f32 %v430, 1.0
        %v432 = vadd.f32 %v431, %v430
        %v433 = vmul.f32 %v432, 0.5
        %v434 = vsub.f32 %v424, %v433
        %v435 = vmax.f32 %v434, 0.0
        %v436 = vsel %vm427, %v435, 0.0
        %437 = vadd.xlane.f32.xlu0 %v436
        %v438 = vpop.xlane.xlu0 %437
        %v439 = vsub.f32 %v438, 1.0
        %vm440 = vcmp.gt.f32.partialorder %v439, 0.0
        %v441 = vsel %vm440, %v433, %v431
        %v442 = vsel %vm440, %v430, %v433
        %v443 = vadd.f32 %v441, %v442
        %v444 = vmul.f32 %v443, 0.5
        %v445 = vsub.f32 %v424, %v444
        %v446 = vmax.f32 %v445, 0.0
        %v447 = vsel %vm427, %v446, 0.0
        %448 = vadd.xlane.f32.xlu0 %v447
        %v449 = vpop.xlane.xlu0 %448
        %v450 = vsub.f32 %v449, 1.0
        %vm451 = vcmp.gt.f32.partialorder %v450, 0.0
        %v452 = vsel %vm451, %v444, %v441
        %v453 = vsel %vm451, %v442, %v444
        %v454 = vadd.f32 %v452, %v453
        %v455 = vmul.f32 %v454, 0.5
        %v456 = vsub.f32 %v424, %v455
        %v457 = vmax.f32 %v456, 0.0
        %v458 = vsel %vm427, %v457, 0.0
        %459 = vadd.xlane.f32.xlu0 %v458
        %v460 = vpop.xlane.xlu0 %459
        %v461 = vsub.f32 %v460, 1.0
        %vm462 = vcmp.gt.f32.partialorder %v461, 0.0
        %v463 = vsel %vm462, %v455, %v452
        %v464 = vsel %vm462, %v453, %v455
        %v465 = vadd.f32 %v463, %v464
        %v466 = vmul.f32 %v465, 0.5
        %v467 = vsub.f32 %v424, %v466
        %v468 = vmax.f32 %v467, 0.0
        %v469 = vsel %vm427, %v468, 0.0
        %470 = vadd.xlane.f32.xlu0 %v469
        %v471 = vpop.xlane.xlu0 %470
        %v472 = vsub.f32 %v471, 1.0
        %vm473 = vcmp.gt.f32.partialorder %v472, 0.0
        %v474 = vsel %vm473, %v466, %v463
        %v475 = vsel %vm473, %v464, %v466
        %v476 = vadd.f32 %v474, %v475
        %v477 = vmul.f32 %v476, 0.5
        %v478 = vsub.f32 %v424, %v477
        %v479 = vmax.f32 %v478, 0.0
        %v480 = vsel %vm427, %v479, 0.0
        %481 = vadd.xlane.f32.xlu0 %v480
        %v482 = vpop.xlane.xlu0 %481
        %v483 = vsub.f32 %v482, 1.0
        %vm484 = vcmp.gt.f32.partialorder %v483, 0.0
        %v485 = vsel %vm484, %v477, %v474
        %v486 = vsel %vm484, %v475, %v477
        %v487 = vadd.f32 %v485, %v486
        %v488 = vmul.f32 %v487, 0.5
        %v489 = vsub.f32 %v424, %v488
        %v490 = vmax.f32 %v489, 0.0
        %v491 = vsel %vm427, %v490, 0.0
        %492 = vadd.xlane.f32.xlu0 %v491
        %v493 = vpop.xlane.xlu0 %492
        %v494 = vsub.f32 %v493, 1.0
        %vm495 = vcmp.gt.f32.partialorder %v494, 0.0
        %v496 = vsel %vm495, %v488, %v485
        %v497 = vsel %vm495, %v486, %v488
        %v498 = vadd.f32 %v496, %v497
        %v499 = vmul.f32 %v498, 0.5
        %v500 = vsub.f32 %v424, %v499
        %v501 = vmax.f32 %v500, 0.0
        %v502 = vsel %vm427, %v501, 0.0
        %503 = vadd.xlane.f32.xlu0 %v502
        %v504 = vpop.xlane.xlu0 %503
        %v505 = vsub.f32 %v504, 1.0
        %vm506 = vcmp.gt.f32.partialorder %v505, 0.0
        %v507 = vsel %vm506, %v499, %v496
        %v508 = vsel %vm506, %v497, %v499
        %v509 = vadd.f32 %v507, %v508
        %v510 = vmul.f32 %v509, 0.5
        %v511 = vsub.f32 %v424, %v510
        %v512 = vmax.f32 %v511, 0.0
        %v513 = vsel %vm427, %v512, 0.0
        %514 = vadd.xlane.f32.xlu0 %v513
        %v515 = vpop.xlane.xlu0 %514
        %v516 = vsub.f32 %v515, 1.0
        %vm517 = vcmp.gt.f32.partialorder %v516, 0.0
        %v518 = vsel %vm517, %v510, %v507
        %v519 = vsel %vm517, %v508, %v510
        %v520 = vadd.f32 %v518, %v519
        %v521 = vmul.f32 %v520, 0.5
        %v522 = vsub.f32 %v424, %v521
        %v523 = vmax.f32 %v522, 0.0
        %v524 = vsel %vm427, %v523, 0.0
        %525 = vadd.xlane.f32.xlu0 %v524
        %v526 = vpop.xlane.xlu0 %525
        %v527 = vsub.f32 %v526, 1.0
        %vm528 = vcmp.gt.f32.partialorder %v527, 0.0
        %v529 = vsel %vm528, %v521, %v518
        %v530 = vsel %vm528, %v519, %v521
        %v531 = vadd.f32 %v529, %v530
        %v532 = vmul.f32 %v531, 0.5
        %v533 = vsub.f32 %v424, %v532
        %v534 = vmax.f32 %v533, 0.0
        %v535 = vsel %vm427, %v534, 0.0
        %536 = vadd.xlane.f32.xlu0 %v535
        %v537 = vpop.xlane.xlu0 %536
        %v538 = vsub.f32 %v537, 1.0
        %vm539 = vcmp.gt.f32.partialorder %v538, 0.0
        %v540 = vsel %vm539, %v532, %v529
        %v541 = vsel %vm539, %v530, %v532
        %v542 = vadd.f32 %v540, %v541
        %v543 = vmul.f32 %v542, 0.5
        %v544 = vsub.f32 %v424, %v543
        %v545 = vmax.f32 %v544, 0.0
        %v546 = vsel %vm427, %v545, 0.0
        %547 = vadd.xlane.f32.xlu0 %v546
        %v548 = vpop.xlane.xlu0 %547
        %v549 = vsub.f32 %v548, 1.0
        %vm550 = vcmp.gt.f32.partialorder %v549, 0.0
        %v551 = vsel %vm550, %v543, %v540
        %v552 = vsel %vm550, %v541, %v543
        %v553 = vadd.f32 %v551, %v552
        %v554 = vmul.f32 %v553, 0.5
        %v555 = vsub.f32 %v424, %v554
        %v556 = vmax.f32 %v555, 0.0
        %v557 = vsel %vm427, %v556, 0.0
        %558 = vadd.xlane.f32.xlu0 %v557
        %v559 = vpop.xlane.xlu0 %558
        %v560 = vsub.f32 %v559, 1.0
        %vm561 = vcmp.gt.f32.partialorder %v560, 0.0
        %v562 = vsel %vm561, %v554, %v551
        %v563 = vsel %vm561, %v552, %v554
        %v564 = vadd.f32 %v562, %v563
        %v565 = vmul.f32 %v564, 0.5
        %v566 = vsub.f32 %v424, %v565
        %v567 = vmax.f32 %v566, 0.0
        %v568 = vsel %vm427, %v567, 0.0
        %569 = vadd.xlane.f32.xlu0 %v568
        %v570 = vpop.xlane.xlu0 %569
        %v571 = vsub.f32 %v570, 1.0
        %vm572 = vcmp.gt.f32.partialorder %v571, 0.0
        %v573 = vsel %vm572, %v565, %v562
        %v574 = vsel %vm572, %v563, %v565
        %v575 = vadd.f32 %v573, %v574
        %v576 = vmul.f32 %v575, 0.5
        %v577 = vsub.f32 %v424, %v576
        %v578 = vmax.f32 %v577, 0.0
        %v579 = vsel %vm427, %v578, 0.0
        %580 = vadd.xlane.f32.xlu0 %v579
        %v581 = vpop.xlane.xlu0 %580
        %v582 = vsub.f32 %v581, 1.0
        %vm583 = vcmp.gt.f32.partialorder %v582, 0.0
        %v584 = vsel %vm583, %v576, %v573
        %v585 = vsel %vm583, %v574, %v576
        %v586 = vadd.f32 %v584, %v585
        %v587 = vmul.f32 %v586, 0.5
        %v588 = vsub.f32 %v424, %v587
        %v589 = vmax.f32 %v588, 0.0
        %v590 = vsel %vm427, %v589, 0.0
        %591 = vadd.xlane.f32.xlu0 %v590
        %v592 = vpop.xlane.xlu0 %591
        %v593 = vsub.f32 %v592, 1.0
        %vm594 = vcmp.gt.f32.partialorder %v593, 0.0
        %v595 = vsel %vm594, %v587, %v584
        %v596 = vsel %vm594, %v585, %v587
        %v597 = vadd.f32 %v595, %v596
        %v598 = vmul.f32 %v597, 0.5
        %v599 = vsub.f32 %v424, %v598
        %v600 = vmax.f32 %v599, 0.0
        %v601 = vsel %vm427, %v600, 0.0
        %602 = vadd.xlane.f32.xlu0 %v601
        %v603 = vpop.xlane.xlu0 %602
        %v604 = vsub.f32 %v603, 1.0
        %vm605 = vcmp.gt.f32.partialorder %v604, 0.0
        %v606 = vsel %vm605, %v598, %v595
        %v607 = vsel %vm605, %v596, %v598
        %v608 = vadd.f32 %v606, %v607
        %v609 = vmul.f32 %v608, 0.5
        %v610 = vsub.f32 %v424, %v609
        %v611 = vmax.f32 %v610, 0.0
        %v612 = vsel %vm427, %v611, 0.0
        %613 = vadd.xlane.f32.xlu0 %v612
        %v614 = vpop.xlane.xlu0 %613
        %v615 = vsub.f32 %v614, 1.0
        %vm616 = vcmp.gt.f32.partialorder %v615, 0.0
        %v617 = vsel %vm616, %v609, %v606
        %v618 = vsel %vm616, %v607, %v609
        %v619 = vadd.f32 %v617, %v618
        %v620 = vmul.f32 %v619, 0.5
        %v621 = vsub.f32 %v424, %v620
        %v622 = vmax.f32 %v621, 0.0
        %v623 = vsel %vm427, %v622, 0.0
        %624 = vadd.xlane.f32.xlu0 %v623
        %v625 = vpop.xlane.xlu0 %624
        %v626 = vsub.f32 %v625, 1.0
        %vm627 = vcmp.gt.f32.partialorder %v626, 0.0
        %v628 = vsel %vm627, %v620, %v617
        %v629 = vsel %vm627, %v618, %v620
        %v630 = vadd.f32 %v628, %v629
        %v631 = vmul.f32 %v630, 0.5
        %vm632 = vcmp.gt.f32.partialorder %v424, %v631
        %v633 = vsel %vm632, 1, 0
        %v634 = vcvt.s32.f32 %v633
        %v635 = vsel %vm427, %v634, 0.0
        %636 = vadd.xlane.f32.xlu0 %v635
        %v637 = vpop.xlane.xlu0 %636
        %v638 = vmax.f32 %v637, 1.0
        %v639 = vmul.f32 %v424, %v634
        %v640 = vsel %vm427, %v639, 0.0
        %641 = vadd.xlane.f32.xlu0 %v640
        %v642 = vpop.xlane.xlu0 %641
        %v643 = vsub.f32 %v642, 1.0
        %v644 = vrcp.pop %v638
        %v645 = vmul.f32 %v643, %v644
        %v646 = vmax.f32 %v628, %v645
        %v647 = vmin.f32 %v629, %v646
        %v648 = vsub.f32 %v424, %v647
        %v649 = vmax.f32 %v648, 0.0
        %650 = vst.msk [vmem:[%s253] sm:$0xff] %vm427, %v649
        %v651 = vld [vmem:[%s266] sm:$0xff]
        %v652 = vmul.f32 %v649, %v651
        %v653 = vsel %vm427, %v652, 0.0
        %654 = vadd.xlane.f32.xlu0 %v653
        %v655 = vpop.xlane.xlu0 %654
        %v657 = vlaneseq
        %v658 = vand.u32 %v657, 127
        %v659 = vlaneseq
        %v660 = vshrl.u32 %v659, 7
        %v661 = vsub.s32 %v658, %v660
        %v662 = vrot.slane %v655, %v661
        %vm664 = vcmask 57344
        %665 = vst.msk [vmem:[%s246] sm:$0x1] %vm664, %v662
        %s666 = sand.u32 %s130, 1
        %s667 = scalar_lea.sflag [#allocation3], %s666
        %s668 = sand.u32 %s130, 1
        %s669 = scalar_lea.vmem [#allocation2], %s668
        %s670 = sand.u32 %s156, 1
        %s671 = scalar_lea.sflag [#allocation5], %s670
        %s672 = sand.u32 %s156, 1
        %s673 = smul.addr %s672, 8
        %s674 = scalar_lea.vmem [#allocation4], %s673
        // Predicated region
        $region37: #{group_select_layer.1} parent=35 // pred_check
          %p675 = pneg %p140
        $region38: #{group_select_layer.1} parent=35 // pred_check_branch
          %677 = sbr.rel (%p675) target = $region40
        $region39: #{group_select_layer.1} parent=35 // pred_region
          %s679 = ssub.s32 16, 16
          %680 = vsyncadd %s667, %s679
          %s681 = smul.addr %s23, 16
          %s682 = scalar_lea.hbm %s4, %s681
          %s684 = sshll.u32 %s669, 4
          %s685 = int_to_ptr.vmem [resolvable:$true] %s684
          %687 = dma.vmem_to_hbm [thread:$0]  %s685, 16, %s682, %s667
        $region40: #{group_select_layer.1} parent=35 // pred_fallthru
          _
        // Predicated region
        $region41: #{group_select_layer.1} parent=35 // pred_check
          %p688 = pneg %p166
        $region42: #{group_select_layer.1} parent=35 // pred_check_branch
          %690 = sbr.rel (%p688) target = $region44
        $region43: #{group_select_layer.1} parent=35 // pred_region
          %s692 = ssub.s32 128, 128
          %693 = vsyncadd %s671, %s692
          %s694 = smul.addr %s23, 128
          %s695 = scalar_lea.hbm %s5, %s694
          %s697 = sshll.u32 %s674, 4
          %s698 = int_to_ptr.vmem [resolvable:$true] %s697
          %700 = dma.vmem_to_hbm [thread:$0]  %s698, 128, %s695, %s671
        $region44: #{group_select_layer.1} parent=35 // pred_fallthru
          _
      $region36: #{group_select_layer.1} parent=5 // pred_fallthru
        _
      %p701 = scmp.le.s32.totalorder 2, %s18
      // Predicated region
      $region45: #{group_select_layer.1} parent=5 // pred_check
        %p702 = pneg %p701
      $region46: #{group_select_layer.1} parent=5 // pred_check_branch
        %704 = sbr.rel (%p702) target = $region48
      $region47: #{group_select_layer.1} parent=5 // pred_region
        %s705 = ssub.s32 %s18, 2
        // Predicated region
        $region49: #{group_select_layer.1} parent=47 // pred_check
          %p706 = pneg %p146
        $region50: #{group_select_layer.1} parent=47 // pred_check_branch
          %708 = sbr.rel (%p706) target = $region52
        $region51: #{group_select_layer.1} parent=47 // pred_region
          %s709 = sand.u32 %s131, 1
          %s710 = scalar_lea.sflag [#allocation3], %s709
          %s711 = sand.u32 %s131, 1
          %s712 = scalar_lea.vmem [#allocation2], %s711
          %713 = dma.done %s710, 16
        $region52: #{group_select_layer.1} parent=47 // pred_fallthru
          _
        // Predicated region
        $region53: #{group_select_layer.1} parent=47 // pred_check
          %p714 = pneg %p172
        $region54: #{group_select_layer.1} parent=47 // pred_check_branch
          %716 = sbr.rel (%p714) target = $region56
        $region55: #{group_select_layer.1} parent=47 // pred_region
          %s717 = sand.u32 %s157, 1
          %s718 = scalar_lea.sflag [#allocation5], %s717
          %s719 = sand.u32 %s157, 1
          %s720 = smul.addr %s719, 8
          %s721 = scalar_lea.vmem [#allocation4], %s720
          %722 = dma.done %s718, 128
        $region56: #{group_select_layer.1} parent=47 // pred_fallthru
          _
      $region48: #{group_select_layer.1} parent=5 // pred_fallthru
        _
    $region6: #{group_select_layer.1} parent=1 // loop_footer
      %s22 = sadd.s32 1, %s18
    $region7: #{group_select_layer.1} parent=1 // loop_footer_branch
      %17 = sbr.rel target = $region3
    $region8: #{group_select_layer.1} parent=1 // loop_exit
      _
    %723 = vsyncpa [#allocation3], 1
    %s724 = scalar_lea.sflag [#allocation3], 1
    %725 = vsyncpa %s724, 1
    %726 = vsyncpa [#allocation5], 1
    %s727 = scalar_lea.sflag [#allocation5], 1
    %728 = vsyncpa %s727, 1

</llo_original>
